<compile_context>
chip_gen: v7x
topology: tpu7x:2x2x1
jax: 0.10.0
libtpu: 0.0.40
codegen_flags: <defaults>
</compile_context>

<pallas_src>
import jax
import jax.numpy as jnp
import numpy as np
from jax.experimental import pallas as pl
from jax.experimental.pallas import tpu as pltpu


_LANES = 128
_SUBLANE_MULT = 32                       # safe for f32(8)/bf16(16)/int8(32) tiles
_INPUT_VMEM_BUDGET = 12 * 1024 * 1024    # double-buffered input blocks per step


# ----------------------------------------------------------------------------
# helpers
# ----------------------------------------------------------------------------
def _round_up(x, m):
    return ((x + m - 1) // m) * m


def _cdiv(a, b):
    return -(-a // b)


def _flatten_pixels(x, rows_pad):
    """(N, ..., H, W) -> (N, ..., rows_pad, 128), zero padded (label 0 == exclude)."""
    *lead, H, W = x.shape
    hw = H * W
    flat = x.reshape(*lead, hw)
    pad = rows_pad * _LANES - hw
    if pad:
        widths = [(0, 0)] * len(lead) + [(0, pad)]
        flat = jnp.pad(flat, widths)
    return flat.reshape(*lead, rows_pad, _LANES)


def _pick_tile_rows():
    """Generation-aware row-tile cap + explicit scoped-VMEM limit."""
    try:
        vmem = pltpu.get_tpu_info().vmem_capacity_bytes
    except Exception:
        return 1024, 32 * 1024 * 1024
    if vmem >= (100 << 20):              # v5e / v6e: 128 MiB VMEM per TC
        return 2048, 64 * 1024 * 1024
    return 1024, 32 * 1024 * 1024        # v7x: 64 MiB VMEM per TC


# ----------------------------------------------------------------------------
# Pallas kernel: weighted cross-entropy with an implicit zero-logit "exclude"
# channel (torch `_addexcl`), per-pixel masking of excluded pixels, and
# accumulation of row-reduced partial sums + kept-pixel counts.
# Supports K logits tensors sharing the same target (fused launch).
# ----------------------------------------------------------------------------
def _make_ce_kernel(num_logits, num_classes, weights, tile_rows, logits_dtype):
    w = [float(v) for v in weights]           # length C+1; w[0] is unused
    uniform = len(set(w[1:])) == 1            # default weights normalize to 1.0
    w_uni = w[1] if uniform else None
    row_groups = tile_rows // 8

    def kernel(*refs):
        target_ref = refs[0]                                  # (1, TR, 128) i8
        logits_refs = refs[1:1 + num_logits]                  # (1, C, TR, 128)
        loss_refs = refs[1 + num_logits:1 + 2 * num_logits]   # (1, 1, 8, 128) f32
        count_ref = refs[1 + 2 * num_logits]                  # (1, 1, 8, 128) f32

        p = pl.program_id(2)

        @pl.when(p == 0)
        def _init():
            for r in loss_refs:
                r[...] = jnp.zeros_like(r)
            count_ref[...] = jnp.zeros_like(count_ref)

        target = target_ref[0].astype(jnp.int32)              # (TR, 128)
        keep_f = (target != 0).astype(jnp.float32)

        # Per-class masks computed once; reused for the weight gather and the
        # target-logit select of every fused logits tensor.
        cls_mask = [target == (c + 1) for c in range(num_classes)]

        # class weight at the target label; excluded / padded pixels (label 0)
        # keep weight 0, reproducing `lossmat[target == 0] = 0`.
        if uniform:
            wt = keep_f if w_uni == 1.0 else keep_f * w_uni
        else:
            wt = jnp.zeros(target.shape, jnp.float32)
            for c in range(num_classes):
                if w[c + 1] != 0.0:
                    wt = jnp.where(cls_mask[c], w[c + 1], wt)

        def _rowsum(x):  # (TR,128) -> (8,128): sublane-aligned VPU adds only
            return x.reshape(row_groups, 8, _LANES).sum(axis=0)

        count_ref[0, 0] += _rowsum(keep_f)

        for li in range(num_logits):
            lref = logits_refs[li]
            # pass 1: running max in the native dtype (bf16 stays packed),
            # including the implicit zero-logit "exclude" channel.
            m_nat = jnp.zeros(target.shape, logits_dtype)
            for c in range(num_classes):
                m_nat = jnp.maximum(m_nat, lref[0, c])
            m = m_nat.astype(jnp.float32)
            # pass 2 (fused): sum-exp and target-logit gather; each class
            # plane is cast to f32 exactly once.
            sumexp = jnp.exp(-m)                               # exclude channel
            tgt_logit = jnp.zeros(target.shape, jnp.float32)
            for c in range(num_classes):
                x = lref[0, c].astype(jnp.float32)
                sumexp = sumexp + jnp.exp(x - m)
                tgt_logit = jnp.where(cls_mask[c], x, tgt_logit)
            # CrossEntropyLoss(weight, reduction='none'):
            #   w[y] * (logsumexp(logits) - logits[y]); masked pixels -> wt==0.
            loss = wt * (m + jnp.log(sumexp) - tgt_logit)
            loss_refs[li][0, 0] += _rowsum(loss)

    return kernel


def weighted_ce_sums_fused(logits_list, target, weights,
                           tile_rows=None, n_splits=2):
    """Fused weighted-CE sums for K logits tensors sharing one target.

    Returns ([loss_sum_0, ..., loss_sum_{K-1}], kept_pixel_count).
    """
    K = len(logits_list)
    N, C, H, W = logits_list[0].shape
    weights = [float(v) for v in np.asarray(weights).reshape(-1)]
    assert len(weights) == C + 1

    if tile_rows is None:
        tile_rows, vmem_limit = _pick_tile_rows()
    else:
        vmem_limit = 64 * 1024 * 1024 if tile_rows > 1024 else 32 * 1024 * 1024

    # Target labels fit in int8 (C is small) -> 1 B/pixel DMA; otherwise i32.
    use_i8 = (C + 1) <= 127
    tgt_itemsize = 1 if use_i8 else 4
    logits_itemsize = jnp.dtype(logits_list[0].dtype).itemsize

    hw = H * W
    rows = _cdiv(hw, _LANES)                  # 128-lane pixel rows

    # Row tile: VMEM-budgeted, sublane-packed, padding-waste minimizing.
    bytes_per_row = _LANES * (tgt_itemsize + K * C * logits_itemsize)
    tr_budget = max(_SUBLANE_MULT, _INPUT_VMEM_BUDGET // (2 * bytes_per_row))
    tr_cap = max(_SUBLANE_MULT,
                 (min(tile_rows, tr_budget) // _SUBLANE_MULT) * _SUBLANE_MULT)
    n_steps = _round_up(max(n_splits, _cdiv(rows, tr_cap)), n_splits)
    tr = _round_up(_cdiv(rows, n_steps), _SUBLANE_MULT)
    rows_pad = n_steps * tr
    steps_per_split = n_steps // n_splits

    tgt_dtype = jnp.int8 if use_i8 else jnp.int32
    target_p = _flatten_pixels(target.astype(tgt_dtype), rows_pad)
    logits_p = [_flatten_pixels(l, rows_pad) for l in logits_list]  # native dtype

    kernel = _make_ce_kernel(K, C, weights, tr, logits_list[0].dtype)

    grid = (N, n_splits, steps_per_split)
    pix_idx = lambda n, s, p, _P=steps_per_split: (n, s * _P + p, 0)
    log_idx = lambda n, s, p, _P=steps_per_split: (n, 0, s * _P + p, 0)
    out_idx = lambda n, s, p: (n, s, 0, 0)

    in_specs = [pl.BlockSpec((1, tr, _LANES), pix_idx)]
    in_specs += [pl.BlockSpec((1, C, tr, _LANES), log_idx)] * K
    out_specs = [pl.BlockSpec((1, 1, 8, _LANES), out_idx)] * (K + 1)
    out_shape = tuple(jax.ShapeDtypeStruct((N, n_splits, 8, _LANES), jnp.float32)
                      for _ in range(K + 1))

    outs = pl.pallas_call(
        kernel,
        out_shape=out_shape,
        grid_spec=pltpu.PrefetchScalarGridSpec(
            num_scalar_prefetch=0,
            grid=grid,
            in_specs=in_specs,
            out_specs=out_specs,
        ),
        compiler_params=pltpu.CompilerParams(
            # batch + row-split axes parallel (megacore), pixel axis reduction.
            dimension_semantics=("parallel", "parallel", "arbitrary"),
            vmem_limit_bytes=vmem_limit),
    )(target_p, *logits_p)

    loss_sums = [jnp.sum(outs[i]) for i in range(K)]
    count = jnp.sum(outs[K])
    return loss_sums, count


def weighted_ce_sums(logits, target, weights, tile_rows=None):
    (s,), c = weighted_ce_sums_fused([logits], target, weights, tile_rows)
    return s, c


# ----------------------------------------------------------------------------
# MuTILsTransform equivalent (glue, plain JAX)
# ----------------------------------------------------------------------------
class MuTILsTransformJax:
    def __init__(self, image_mean=None, image_std=None, ignore_ks=None):
        self.image_mean = image_mean or [0.485, 0.456, 0.406]
        self.image_std = image_std or [0.229, 0.224, 0.225]
        self.ignore_ks = ignore_ks or ['idx', 'roiname']

    def __call__(self, data):
        data_new = {k: [] for k in data[0].keys()}
        for roi in data:
            for k, v in roi.items():
                data_new[k].append(v)
        data = {k: v for k, v in data_new.items() if k not in self.ignore_ks}
        carryover = {k: v for k, v in data_new.items() if k in self.ignore_ks}
        for k in ['highres_rgb', 'lowres_rgb']:
            if k in data:
                for idx, image in enumerate(data[k]):
                    if image.ndim != 4:
                        raise ValueError(
                            'images is expected to be a list of 4d tensors of '
                            'shape [1, C, H, W], got {}'.format(image.shape))
                    data[k][idx] = self.normalize(image)
        data = {k: jnp.concatenate(v, axis=0) for k, v in data.items()}
        data.update(carryover)
        return data

    def normalize(self, image):
        mean = jnp.asarray(self.image_mean, image.dtype)
        std = jnp.asarray(self.image_std, image.dtype)
        return (image - mean[None, :, None, None]) / std[None, :, None, None]


# ----------------------------------------------------------------------------
# MuTILsLoss equivalent
# ----------------------------------------------------------------------------
class MuTILsLossPallas:
    def __init__(self, nclasses_roi, nclasses_hpf, transform=None,
                 region_weights=None, nucleus_weights=None, loss_weights=None):
        self.nclasses_roi = nclasses_roi
        self.nclasses_hpf = nclasses_hpf
        # NOTE: RegionCellCombination.NUCLEUS_CODES['BACKGROUND'] is stored in
        # the original __init__ but never used in forward(); omitted here.
        self.region_weights = region_weights or [0.0] + [1.0] * nclasses_roi
        self.nucleus_weights = nucleus_weights or [0.0] + [1.0] * nclasses_hpf
        self.loss_weights = loss_weights
        self.normalize_weights()
        self.transform = transform or MuTILsTransformJax()

    def normalize_weights(self):
        maxwt_r = max(self.region_weights)
        maxwt_n = max(self.nucleus_weights)
        self.region_weights = [j / maxwt_r for j in self.region_weights]
        self.nucleus_weights = [j / maxwt_n for j in self.nucleus_weights]

    def __call__(self, inference, truth):
        truth = self.transform(truth)
        truth['highres_mask'] = truth['highres_mask'][:, 0:2, :, :]
        hpf_mask = self.parse_hpf_mask(
            mask=truth['highres_mask'],
            bounds=inference['hpf_hres_bounds'],
            roidxs=inference['hpf_roidx'])

        roi_sum, lres_pixcount = weighted_ce_sums(
            inference['roi_region_logits'], truth['lowres_mask'][:, 0, ...],
            self.region_weights)
        hpfr_sum, hpf_rpixcount = weighted_ce_sums(
            inference['hpf_region_logits'], hpf_mask[:, 0, ...],
            self.region_weights)
        # hpf_nuclei_pre and hpf_nuclei share the same target -> one launch.
        (hpfnp_sum, hpfn_sum), hpf_npixcount = weighted_ce_sums_fused(
            [inference['hpf_nuclei_pre'], inference['hpf_nuclei']],
            hpf_mask[:, 1, ...], self.nucleus_weights)

        losses = {
            'roi_regions': self._div(roi_sum, lres_pixcount),
            'hpf_regions': self._div(hpfr_sum, hpf_rpixcount),
            'hpf_nuclei_pre': self._div(hpfnp_sum, hpf_npixcount),
            'hpf_nuclei': self._div(hpfn_sum, hpf_npixcount),
        }
        return self.process_losses(losses)

    @staticmethod
    def _div(numer, denom):
        """Return zero instead of Inf / division by zero."""
        safe = jnp.where(denom < 1e-8, 1.0, denom)
        return jnp.where(denom < 1e-8, 0.0 * numer, numer / safe)

    def process_losses(self, losses):
        lwts = self.loss_weights or {ln: 1.0 for ln in losses.keys()}
        lnames = list(losses.keys())
        losses['all'] = 0.0
        for lname in lnames:
            losses['all'] += losses[lname] * lwts[lname]
        losses['all'] /= len(losses) - 1
        return losses

    @staticmethod
    def parse_hpf_mask(mask, bounds, roidxs):
        """Crop + concatenate HPF masks (indexing glue).

        Pass `bounds`/`roidxs` as host data (numpy / Python ints) so no
        device->host sync blocks kernel dispatch.
        """
        hpf_mask = []
        bounds = np.asarray(bounds)
        roidxs = np.asarray(roidxs)
        for hno in range(bounds.shape[0]):
            bd = [int(j) for j in bounds[hno, ...].tolist()]
            hpf_mask.append(
                mask[[int(roidxs[hno])], :, bd[1]:bd[3], bd[0]:bd[2]])
        return jnp.concatenate(hpf_mask, axis=0)


# ----------------------------------------------------------------------------
# Pure-JAX reference of the hot path, used for a sanity check.
# ----------------------------------------------------------------------------
def _ref_ce_sums(logits, target, weights):
    N, C, H, W = logits.shape
    full = jnp.concatenate(
        [jnp.zeros((N, 1, H, W), logits.dtype), logits], axis=1)
    logp = jax.nn.log_softmax(full.astype(jnp.float32), axis=1)
    tgt_logp = jnp.take_along_axis(logp, target[:, None, :, :], axis=1)[:, 0]
    w = jnp.asarray(weights, jnp.float32)[target]
    loss = -w * tgt_logp
    keep = target != 0
    loss = jnp.where(keep, loss, 0.0)
    return loss.sum(), keep.sum().astype(jnp.float32)


if __name__ == "__main__":
    key = jax.random.PRNGKey(0)

    nclasses_roi, nclasses_hpf = 5, 3
    n_rois, n_hpf = 2, 3
    Hh = Wh = 32      # highres mask
    Hl = Wl = 16      # lowres mask / ROI logits
    hpf_sz = 16       # HPF crop size

    # ---- build per-ROI truth dicts (list of dicts, as the torch API expects)
    truth = []
    for r in range(n_rois):
        key, k1, k2, k3, k4, k5 = jax.random.split(key, 6)
        region_hr = jax.random.randint(k1, (1, 1, Hh, Wh), 0, nclasses_roi + 1)
        nucleus_hr = jax.random.randint(k2, (1, 1, Hh, Wh), 0, nclasses_hpf + 1)
        junk = jnp.zeros((1, 1, Hh, Wh), jnp.int32)
        highres_mask = jnp.concatenate(
            [region_hr, nucleus_hr, junk], axis=1).astype(jnp.int32)
        lowres_mask = jax.random.randint(
            k3, (1, 1, Hl, Wl), 0, nclasses_roi + 1).astype(jnp.int32)
        truth.append({
            'highres_rgb': jax.random.uniform(k4, (1, 3, Hh, Wh), jnp.float32),
            'lowres_rgb': jax.random.uniform(k5, (1, 3, Hl, Wl), jnp.float32),
            'highres_mask': highres_mask,
            'lowres_mask': lowres_mask,
            'idx': r,
            'roiname': f'roi_{r}',
        })

    # ---- build inference dict (bounds / roidxs as HOST data -> no sync)
    key, kA, kB, kC, kD = jax.random.split(key, 5)
    inference = {
        'hpf_hres_bounds': np.asarray(
            [[0, 0, 16, 16], [8, 8, 24, 24], [16, 16, 32, 32]], np.int32),
        'hpf_roidx': np.asarray([0, 1, 1], np.int32),
        'roi_region_logits': jax.random.normal(
            kA, (n_rois, nclasses_roi, Hl, Wl), jnp.float32),
        'hpf_region_logits': jax.random.normal(
            kB, (n_hpf, nclasses_roi, hpf_sz, hpf_sz), jnp.float32),
        'hpf_nuclei_pre': jax.random.normal(
            kC, (n_hpf, nclasses_hpf, hpf_sz, hpf_sz), jnp.float32),
        'hpf_nuclei': jax.random.normal(
            kD, (n_hpf, nclasses_hpf, hpf_sz, hpf_sz), jnp.float32),
    }

    loss_fn = MuTILsLossPallas(nclasses_roi=nclasses_roi,
                               nclasses_hpf=nclasses_hpf)
    losses = loss_fn(inference, truth)
    jax.block_until_ready(losses['all'])

    # ---- sanity check against a pure-JAX reference of the full forward
    truth_b = loss_fn.transform(truth)
    hr_mask = truth_b['highres_mask'][:, 0:2, :, :]
    hpf_mask = loss_fn.parse_hpf_mask(
        hr_mask, inference['hpf_hres_bounds'], inference['hpf_roidx'])
    rw = loss_fn.region_weights
    nw = loss_fn.nucleus_weights
    ref = {}
    s, c = _ref_ce_sums(inference['roi_region_logits'],
                        truth_b['lowres_mask'][:, 0, ...], rw)
    ref['roi_regions'] = loss_fn._div(s, c)
    s, c = _ref_ce_sums(inference['hpf_region_logits'], hpf_mask[:, 0, ...], rw)
    ref['hpf_regions'] = loss_fn._div(s, c)
    s, c = _ref_ce_sums(inference['hpf_nuclei_pre'], hpf_mask[:, 1, ...], nw)
    ref['hpf_nuclei_pre'] = loss_fn._div(s, c)
    s, _ = _ref_ce_sums(inference['hpf_nuclei'], hpf_mask[:, 1, ...], nw)
    ref['hpf_nuclei'] = loss_fn._div(s, c)
    ref = loss_fn.process_losses(ref)

    for k in ['roi_regions', 'hpf_regions', 'hpf_nuclei_pre', 'hpf_nuclei', 'all']:
        np.testing.assert_allclose(np.asarray(losses[k]), np.asarray(ref[k]),
                                   rtol=1e-3, atol=1e-3)

    print("KERNEL_OK")
</pallas_src>

<mosaic_0001>
module attributes {stable_mosaic.version = 11 : i64} {
  func.func @kernel(%arg0: i32, %arg1: i32, %arg2: i32, %arg3: memref<1x32x128xi8, #tpu.memory_space<vmem>>, %arg4: memref<1x5x32x128xf32, #tpu.memory_space<vmem>>, %arg5: memref<1x1x8x128xf32, #tpu.memory_space<vmem>>, %arg6: memref<1x1x8x128xf32, #tpu.memory_space<vmem>>) attributes {dimension_semantics = [#tpu.dimension_semantics<parallel>, #tpu.dimension_semantics<parallel>, #tpu.dimension_semantics<arbitrary>], iteration_bounds = array<i64: 2, 2, 1>, scalar_prefetch = 0 : i64, scratch_operands = 0 : i64, tpu.core_type = #tpu.core_type<tc>, window_params = [{transform_indices = @transform_0, window_bounds = array<i64: 1, 32, 128>}, {transform_indices = @transform_1, window_bounds = array<i64: 1, 5, 32, 128>}, {transform_indices = @transform_2, window_bounds = array<i64: 1, 1, 8, 128>}, {transform_indices = @transform_3, window_bounds = array<i64: 1, 1, 8, 128>}]} {
    %c0_i32 = arith.constant 0 : i32
    %0 = arith.cmpi eq, %arg2, %c0_i32 : i32
    %1 = arith.extui %0 : i1 to i32
    %c0_i32_0 = arith.constant 0 : i32
    %2 = arith.cmpi ne, %1, %c0_i32_0 : i32
    scf.if %2 {
      %cst_60 = arith.constant 0.000000e+00 : f32
      %90 = vector.broadcast %cst_60 : f32 to vector<1x1x8x128xf32>
      %c0_61 = arith.constant 0 : index
      %c0_62 = arith.constant 0 : index
      %c0_63 = arith.constant 0 : index
      %c0_64 = arith.constant 0 : index
      %91 = vector.load %arg5[%c0_61, %c0_62, %c0_63, %c0_64] : memref<1x1x8x128xf32, #tpu.memory_space<vmem>>, vector<1x1x8x128xf32>
      tpu.vector_store %arg5[%c0_61, %c0_62, %c0_63, %c0_64], %90 {strides = array<i32>} : memref<1x1x8x128xf32, #tpu.memory_space<vmem>>, vector<1x1x8x128xf32>,
      %cst_65 = arith.constant 0.000000e+00 : f32
      %92 = vector.broadcast %cst_65 : f32 to vector<1x1x8x128xf32>
      %c0_66 = arith.constant 0 : index
      %c0_67 = arith.constant 0 : index
      %c0_68 = arith.constant 0 : index
      %c0_69 = arith.constant 0 : index
      %93 = vector.load %arg6[%c0_66, %c0_67, %c0_68, %c0_69] : memref<1x1x8x128xf32, #tpu.memory_space<vmem>>, vector<1x1x8x128xf32>
      tpu.vector_store %arg6[%c0_66, %c0_67, %c0_68, %c0_69], %92 {strides = array<i32>} : memref<1x1x8x128xf32, #tpu.memory_space<vmem>>, vector<1x1x8x128xf32>,
    } else {
    }
    %c0 = arith.constant 0 : index
    %c0_1 = arith.constant 0 : index
    %c0_2 = arith.constant 0 : index
    %3 = vector.load %arg3[%c0, %c0_1, %c0_2] : memref<1x32x128xi8, #tpu.memory_space<vmem>>, vector<1x32x128xi8>
    %4 = vector.shape_cast %3 : vector<1x32x128xi8> to vector<32x128xi8>
    %5 = arith.extsi %4 : vector<32x128xi8> to vector<32x128xi32>
    %c0_i32_3 = arith.constant 0 : i32
    %6 = vector.broadcast %c0_i32_3 : i32 to vector<32x128xi32>
    %7 = arith.cmpi ne, %5, %6 : vector<32x128xi32>
    %8 = arith.extui %7 : vector<32x128xi1> to vector<32x128xi32>
    %9 = arith.sitofp %8 : vector<32x128xi32> to vector<32x128xf32>
    %c1_i32 = arith.constant 1 : i32
    %10 = vector.broadcast %c1_i32 : i32 to vector<32x128xi32>
    %11 = arith.cmpi eq, %5, %10 : vector<32x128xi32>
    %c2_i32 = arith.constant 2 : i32
    %12 = vector.broadcast %c2_i32 : i32 to vector<32x128xi32>
    %13 = arith.cmpi eq, %5, %12 : vector<32x128xi32>
    %c3_i32 = arith.constant 3 : i32
    %14 = vector.broadcast %c3_i32 : i32 to vector<32x128xi32>
    %15 = arith.cmpi eq, %5, %14 : vector<32x128xi32>
    %c4_i32 = arith.constant 4 : i32
    %16 = vector.broadcast %c4_i32 : i32 to vector<32x128xi32>
    %17 = arith.cmpi eq, %5, %16 : vector<32x128xi32>
    %c5_i32 = arith.constant 5 : i32
    %18 = vector.broadcast %c5_i32 : i32 to vector<32x128xi32>
    %19 = arith.cmpi eq, %5, %18 : vector<32x128xi32>
    %c0_4 = arith.constant 0 : index
    %c0_5 = arith.constant 0 : index
    %c0_6 = arith.constant 0 : index
    %c0_7 = arith.constant 0 : index
    %20 = vector.load %arg6[%c0_4, %c0_5, %c0_6, %c0_7] : memref<1x1x8x128xf32, #tpu.memory_space<vmem>>, vector<1x1x8x128xf32>
    %21 = vector.shape_cast %20 : vector<1x1x8x128xf32> to vector<8x128xf32>
    %22 = vector.shape_cast %9 : vector<32x128xf32> to vector<4x8x128xf32>
    %cst = arith.constant dense<0.000000e+00> : vector<8x128xf32>
    %23 = vector.multi_reduction <add>, %22, %cst [0] : vector<4x8x128xf32> to vector<8x128xf32>
    %24 = arith.addf %21, %23 : vector<8x128xf32>
    %c0_8 = arith.constant 0 : index
    %c0_9 = arith.constant 0 : index
    %c0_10 = arith.constant 0 : index
    %c0_11 = arith.constant 0 : index
    %25 = vector.load %arg6[%c0_8, %c0_9, %c0_10, %c0_11] : memref<1x1x8x128xf32, #tpu.memory_space<vmem>>, vector<1x1x8x128xf32>
    %26 = vector.shape_cast %25 : vector<1x1x8x128xf32> to vector<8x128xf32>
    %27 = vector.shape_cast %24 : vector<8x128xf32> to vector<1x1x8x128xf32>
    tpu.vector_store %arg6[%c0_8, %c0_9, %c0_10, %c0_11], %27 {strides = array<i32>} : memref<1x1x8x128xf32, #tpu.memory_space<vmem>>, vector<1x1x8x128xf32>,
    %cst_12 = arith.constant 0.000000e+00 : f32
    %28 = vector.broadcast %cst_12 : f32 to vector<32x128xf32>
    %c0_13 = arith.constant 0 : index
    %c0_14 = arith.constant 0 : index
    %c0_15 = arith.constant 0 : index
    %c0_16 = arith.constant 0 : index
    %29 = vector.load %arg4[%c0_13, %c0_14, %c0_15, %c0_16] : memref<1x5x32x128xf32, #tpu.memory_space<vmem>>, vector<1x1x32x128xf32>
    %30 = vector.shape_cast %29 : vector<1x1x32x128xf32> to vector<32x128xf32>
    %31 = arith.maximumf %28, %30 : vector<32x128xf32>
    %c0_17 = arith.constant 0 : index
    %c1 = arith.constant 1 : index
    %c0_18 = arith.constant 0 : index
    %c0_19 = arith.constant 0 : index
    %32 = vector.load %arg4[%c0_17, %c1, %c0_18, %c0_19] : memref<1x5x32x128xf32, #tpu.memory_space<vmem>>, vector<1x1x32x128xf32>
    %33 = vector.shape_cast %32 : vector<1x1x32x128xf32> to vector<32x128xf32>
    %34 = arith.maximumf %31, %33 : vector<32x128xf32>
    %c0_20 = arith.constant 0 : index
    %c2 = arith.constant 2 : index
    %c0_21 = arith.constant 0 : index
    %c0_22 = arith.constant 0 : index
    %35 = vector.load %arg4[%c0_20, %c2, %c0_21, %c0_22] : memref<1x5x32x128xf32, #tpu.memory_space<vmem>>, vector<1x1x32x128xf32>
    %36 = vector.shape_cast %35 : vector<1x1x32x128xf32> to vector<32x128xf32>
    %37 = arith.maximumf %34, %36 : vector<32x128xf32>
    %c0_23 = arith.constant 0 : index
    %c3 = arith.constant 3 : index
    %c0_24 = arith.constant 0 : index
    %c0_25 = arith.constant 0 : index
    %38 = vector.load %arg4[%c0_23, %c3, %c0_24, %c0_25] : memref<1x5x32x128xf32, #tpu.memory_space<vmem>>, vector<1x1x32x128xf32>
    %39 = vector.shape_cast %38 : vector<1x1x32x128xf32> to vector<32x128xf32>
    %40 = arith.maximumf %37, %39 : vector<32x128xf32>
    %c0_26 = arith.constant 0 : index
    %c4 = arith.constant 4 : index
    %c0_27 = arith.constant 0 : index
    %c0_28 = arith.constant 0 : index
    %41 = vector.load %arg4[%c0_26, %c4, %c0_27, %c0_28] : memref<1x5x32x128xf32, #tpu.memory_space<vmem>>, vector<1x1x32x128xf32>
    %42 = vector.shape_cast %41 : vector<1x1x32x128xf32> to vector<32x128xf32>
    %43 = arith.maximumf %40, %42 : vector<32x128xf32>
    %cst_29 = arith.constant 0.000000e+00 : f32
    %44 = vector.broadcast %cst_29 : f32 to vector<32x128xf32>
    %45 = arith.subf %44, %43 : vector<32x128xf32>
    %46 = math.exp %45 : vector<32x128xf32>
    %cst_30 = arith.constant 0.000000e+00 : f32
    %47 = vector.broadcast %cst_30 : f32 to vector<32x128xf32>
    %c0_31 = arith.constant 0 : index
    %c0_32 = arith.constant 0 : index
    %c0_33 = arith.constant 0 : index
    %c0_34 = arith.constant 0 : index
    %48 = vector.load %arg4[%c0_31, %c0_32, %c0_33, %c0_34] : memref<1x5x32x128xf32, #tpu.memory_space<vmem>>, vector<1x1x32x128xf32>
    %49 = vector.shape_cast %48 : vector<1x1x32x128xf32> to vector<32x128xf32>
    %50 = arith.subf %49, %43 : vector<32x128xf32>
    %51 = math.exp %50 : vector<32x128xf32>
    %52 = arith.addf %46, %51 : vector<32x128xf32>
    %53 = arith.select %11, %49, %47 : vector<32x128xi1>, vector<32x128xf32>
    %c0_35 = arith.constant 0 : index
    %c1_36 = arith.constant 1 : index
    %c0_37 = arith.constant 0 : index
    %c0_38 = arith.constant 0 : index
    %54 = vector.load %arg4[%c0_35, %c1_36, %c0_37, %c0_38] : memref<1x5x32x128xf32, #tpu.memory_space<vmem>>, vector<1x1x32x128xf32>
    %55 = vector.shape_cast %54 : vector<1x1x32x128xf32> to vector<32x128xf32>
    %56 = arith.subf %55, %43 : vector<32x128xf32>
    %57 = math.exp %56 : vector<32x128xf32>
    %58 = arith.addf %52, %57 : vector<32x128xf32>
    %59 = arith.select %13, %55, %53 : vector<32x128xi1>, vector<32x128xf32>
    %c0_39 = arith.constant 0 : index
    %c2_40 = arith.constant 2 : index
    %c0_41 = arith.constant 0 : index
    %c0_42 = arith.constant 0 : index
    %60 = vector.load %arg4[%c0_39, %c2_40, %c0_41, %c0_42] : memref<1x5x32x128xf32, #tpu.memory_space<vmem>>, vector<1x1x32x128xf32>
    %61 = vector.shape_cast %60 : vector<1x1x32x128xf32> to vector<32x128xf32>
    %62 = arith.subf %61, %43 : vector<32x128xf32>
    %63 = math.exp %62 : vector<32x128xf32>
    %64 = arith.addf %58, %63 : vector<32x128xf32>
    %65 = arith.select %15, %61, %59 : vector<32x128xi1>, vector<32x128xf32>
    %c0_43 = arith.constant 0 : index
    %c3_44 = arith.constant 3 : index
    %c0_45 = arith.constant 0 : index
    %c0_46 = arith.constant 0 : index
    %66 = vector.load %arg4[%c0_43, %c3_44, %c0_45, %c0_46] : memref<1x5x32x128xf32, #tpu.memory_space<vmem>>, vector<1x1x32x128xf32>
    %67 = vector.shape_cast %66 : vector<1x1x32x128xf32> to vector<32x128xf32>
    %68 = arith.subf %67, %43 : vector<32x128xf32>
    %69 = math.exp %68 : vector<32x128xf32>
    %70 = arith.addf %64, %69 : vector<32x128xf32>
    %71 = arith.select %17, %67, %65 : vector<32x128xi1>, vector<32x128xf32>
    %c0_47 = arith.constant 0 : index
    %c4_48 = arith.constant 4 : index
    %c0_49 = arith.constant 0 : index
    %c0_50 = arith.constant 0 : index
    %72 = vector.load %arg4[%c0_47, %c4_48, %c0_49, %c0_50] : memref<1x5x32x128xf32, #tpu.memory_space<vmem>>, vector<1x1x32x128xf32>
    %73 = vector.shape_cast %72 : vector<1x1x32x128xf32> to vector<32x128xf32>
    %74 = arith.subf %73, %43 : vector<32x128xf32>
    %75 = math.exp %74 : vector<32x128xf32>
    %76 = arith.addf %70, %75 : vector<32x128xf32>
    %77 = arith.select %19, %73, %71 : vector<32x128xi1>, vector<32x128xf32>
    %78 = math.log %76 : vector<32x128xf32>
    %79 = arith.addf %43, %78 : vector<32x128xf32>
    %80 = arith.subf %79, %77 : vector<32x128xf32>
    %81 = arith.mulf %9, %80 : vector<32x128xf32>
    %c0_51 = arith.constant 0 : index
    %c0_52 = arith.constant 0 : index
    %c0_53 = arith.constant 0 : index
    %c0_54 = arith.constant 0 : index
    %82 = vector.load %arg5[%c0_51, %c0_52, %c0_53, %c0_54] : memref<1x1x8x128xf32, #tpu.memory_space<vmem>>, vector<1x1x8x128xf32>
    %83 = vector.shape_cast %82 : vector<1x1x8x128xf32> to vector<8x128xf32>
    %84 = vector.shape_cast %81 : vector<32x128xf32> to vector<4x8x128xf32>
    %cst_55 = arith.constant dense<0.000000e+00> : vector<8x128xf32>
    %85 = vector.multi_reduction <add>, %84, %cst_55 [0] : vector<4x8x128xf32> to vector<8x128xf32>
    %86 = arith.addf %83, %85 : vector<8x128xf32>
    %c0_56 = arith.constant 0 : index
    %c0_57 = arith.constant 0 : index
    %c0_58 = arith.constant 0 : index
    %c0_59 = arith.constant 0 : index
    %87 = vector.load %arg5[%c0_56, %c0_57, %c0_58, %c0_59] : memref<1x1x8x128xf32, #tpu.memory_space<vmem>>, vector<1x1x8x128xf32>
    %88 = vector.shape_cast %87 : vector<1x1x8x128xf32> to vector<8x128xf32>
    %89 = vector.shape_cast %86 : vector<8x128xf32> to vector<1x1x8x128xf32>
    tpu.vector_store %arg5[%c0_56, %c0_57, %c0_58, %c0_59], %89 {strides = array<i32>} : memref<1x1x8x128xf32, #tpu.memory_space<vmem>>, vector<1x1x8x128xf32>,
    return
  }
  func.func @transform_0(%arg0: i32, %arg1: i32, %arg2: i32) -> (i32, i32, i32) {
    %c1_i32 = arith.constant 1 : i32
    %0 = arith.muli %arg1, %c1_i32 : i32
    %1 = arith.addi %0, %arg2 : i32
    %c0_i32 = arith.constant 0 : i32
    %c0_i32_0 = arith.constant 0 : i32
    return %arg0, %1, %c0_i32 : i32, i32, i32
  }
  func.func @transform_1(%arg0: i32, %arg1: i32, %arg2: i32) -> (i32, i32, i32, i32) {
    %c1_i32 = arith.constant 1 : i32
    %0 = arith.muli %arg1, %c1_i32 : i32
    %1 = arith.addi %0, %arg2 : i32
    %c0_i32 = arith.constant 0 : i32
    %c0_i32_0 = arith.constant 0 : i32
    %c0_i32_1 = arith.constant 0 : i32
    return %arg0, %c0_i32, %1, %c0_i32_0 : i32, i32, i32, i32
  }
  func.func @transform_2(%arg0: i32, %arg1: i32, %arg2: i32) -> (i32, i32, i32, i32) {
    %c0_i32 = arith.constant 0 : i32
    %c0_i32_0 = arith.constant 0 : i32
    %c0_i32_1 = arith.constant 0 : i32
    return %arg0, %arg1, %c0_i32, %c0_i32_0 : i32, i32, i32, i32
  }
  func.func @transform_3(%arg0: i32, %arg1: i32, %arg2: i32) -> (i32, i32, i32, i32) {
    %c0_i32 = arith.constant 0 : i32
    %c0_i32_0 = arith.constant 0 : i32
    %c0_i32_1 = arith.constant 0 : i32
    return %arg0, %arg1, %c0_i32, %c0_i32_0 : i32, i32, i32, i32
  }
}

</mosaic_0001>

<llo_original>
// kernel: tpu_custom_call.1
$region0: #{tpu_custom_call.1}
  #allocation0 [shape = 'u32[]', space=smem, size = 0x4, offset = 0x4, fixed_abs, tag = 'smem constant byte address 0x4 - core index']
  #allocation1 [shape = 'u32[144,128]{1,0:T(1,128)}', space=vmem, size = 0x12000, scoped, tag = 'internal scratch']
  #allocation10 [shape = 's32[]', space=sflag, size = 0x4, offset = 0, fixed_abs, tag = 'sflag constant byte address 0x0 - dummy sync flag']
  %s0 = inlined_call_operand.hbm [shape: s8[2,64,128], index: 0, kind: input, shape index: {}]
  %s1 = inlined_call_operand.hbm [shape: f32[2,5,64,128], index: 1, kind: input, shape index: {}]
  %s2 = inlined_call_operand.hbm [shape: f32[2,2,8,128], index: 2, kind: output, shape index: {0}]
  %s3 = inlined_call_operand.hbm [shape: f32[2,2,8,128], index: 3, kind: output, shape index: {1}]
  %4 = xla_tuple %s2, %s3
  %s5 = sld [smem:[#allocation0]]
  $region61: #{tpu_custom_call.1} parent=0
    _
  %s7 = ssub.s32 1, %s5
  %s8 = scalar_select 0, %s7, %s5
  $region1: #{tpu_custom_call.1} parent=0
    #allocation2 [shape = 'u8[8192]{0}', space=vmem, size = 0x2000, scoped, tag = 'input window, operand 0']
    #allocation3 [shape = 's32[2]{0}', space=sflag, size = 0x8, scoped, tag = 'scoped memory for tpu_custom_call.1']
    #allocation4 [shape = 's32[2]{0}', space=sflag, size = 0x8, scoped, tag = 'scoped memory for tpu_custom_call.1']
    #allocation5 [shape = 'u8[163840]{0}', space=vmem, size = 0x28000, scoped, tag = 'input window, operand 1']
    #allocation6 [shape = 's32[2]{0}', space=sflag, size = 0x8, scoped, tag = 'scoped memory for tpu_custom_call.1']
    #allocation7 [shape = 'u8[8192]{0}', space=vmem, size = 0x2000, scoped, tag = 'output window, operand 0']
    #allocation8 [shape = 'u8[8192]{0}', space=vmem, size = 0x2000, scoped, tag = 'output window, operand 1']
    #allocation9 [shape = 's32[2]{0}', space=sflag, size = 0x8, scoped, tag = 'scoped memory for tpu_custom_call.1']
    %9 = vsyncpa [#allocation3], 0
    %s10 = scalar_lea.sflag [#allocation3], 1
    %11 = vsyncpa %s10, 0
    %12 = vsyncpa [#allocation6], 0
    %s13 = scalar_lea.sflag [#allocation6], 1
    %14 = vsyncpa %s13, 0
    %15 = vsyncpa [#allocation4], 0
    %s16 = scalar_lea.sflag [#allocation4], 1
    %17 = vsyncpa %s16, 0
    %18 = vsyncpa [#allocation9], 0
    %s19 = scalar_lea.sflag [#allocation9], 1
    %20 = vsyncpa %s19, 0
    loop: start=0, step=1, limit=6
    $region2: #{tpu_custom_call.1} parent=1 // loop_pre_header
      _
    $region3: #{tpu_custom_call.1} parent=1 // loop_header
      %s22 = sphi 0, %s26
      %p23 = scmp.ge.s32.totalorder %s22, 6
      %s29 = sphi 0, %s48
      %s30 = sphi 0, %s44
      %s31 = sphi 0, %s40
      %s32 = sphi 0, %s29
      %s33 = sphi 0, %s30
      %s34 = sphi 0, %s31
      %s35 = sphi 0, %s32
      %s36 = sphi 0, %s33
      %s37 = sphi 0, %s34
      %s55 = sphi 0, %s57
      %s58 = sphi 0, %s55
      %s59 = sphi 0, %s58
      %s75 = sphi 0, %s59
      %s85 = sphi 0, %s87
      %s88 = sphi 0, %s85
      %s89 = sphi 0, %s88
      %s105 = sphi 0, %s89
      %s113 = sphi 0, %s115
      %s116 = sphi 0, %s113
      %s117 = sphi 0, %s116
      %s133 = sphi 0, %s117
      %s141 = sphi 0, %s143
      %s144 = sphi 0, %s141
      %s145 = sphi 0, %s144
      %s161 = sphi 0, %s145
    $region4: #{tpu_custom_call.1} parent=1 // loop_header_branch
      %25 = sbr.rel (%p23) target = $region8
    $region5: #{tpu_custom_call.1} parent=1 // loop_body
      %s27 = ssub.s32 %s22, 1
      %s28 = ssub.s32 %s22, 2
      %s38 = sadd.s32 1, %s31
      %p39 = scmp.ge.s32.totalorder %s38, 1
      %s40 = scalar_select %p39, 0, %s38
      %s41 = sadd.s32 1, %s30
      %s42 = scalar_select %p39, %s41, %s30
      %p43 = scmp.ge.s32.totalorder %s42, 2
      %s44 = scalar_select %p43, 0, %s42
      %s45 = sadd.s32 1, %s29
      %s46 = scalar_select %p43, %s45, %s29
      %p47 = scmp.ge.s32.totalorder %s46, 2
      %s48 = scalar_select %p47, 0, %s46
      %s49 = sadd.s32 %s30, %s31
      %s50 = sadd.s32 %s44, %s40
      %s51 = ssub.s32 %s29, %s48
      %s52 = ssub.s32 %s49, %s50
      %s53 = sor.u32 %s51, %s52
      %p54 = scmp.eq.s32.totalorder %s53, 0
      %s56 = sadd.s32 %s55, 1
      %s57 = scalar_select %p54, %s55, %s56
      %p60 = pneg %p54
      %p61 = scmp.eq.s32.totalorder %s22, 3
      %p62 = por %p60, %p61
      %p63 = scmp.ne.s32.totalorder %s55, %s58
      %p64 = scmp.eq.s32.totalorder %s22, 0
      %p65 = por %p63, %p64
      %p66 = scmp.ne.s32.totalorder %s55, %s58
      %p67 = scmp.eq.s32.totalorder %s27, 3
      %p68 = por %p66, %p67
      %p69 = scmp.ne.s32.totalorder %s58, %s59
      %p70 = scmp.eq.s32.totalorder %s27, 0
      %p71 = por %p69, %p70
      %p72 = scmp.ne.s32.totalorder %s58, %s59
      %p73 = scmp.eq.s32.totalorder %s28, 3
      %p74 = por %p72, %p73
      %p76 = scmp.ne.s32.totalorder %s59, %s75
      %p77 = scmp.eq.s32.totalorder %s28, 0
      %p78 = por %p76, %p77
      %s79 = sadd.s32 %s30, %s31
      %s80 = sadd.s32 %s44, %s40
      %s81 = ssub.s32 %s29, %s48
      %s82 = ssub.s32 %s79, %s80
      %s83 = sor.u32 %s81, %s82
      %p84 = scmp.eq.s32.totalorder %s83, 0
      %s86 = sadd.s32 %s85, 1
      %s87 = scalar_select %p84, %s85, %s86
      %p90 = pneg %p84
      %p91 = scmp.eq.s32.totalorder %s22, 3
      %p92 = por %p90, %p91
      %p93 = scmp.ne.s32.totalorder %s85, %s88
      %p94 = scmp.eq.s32.totalorder %s22, 0
      %p95 = por %p93, %p94
      %p96 = scmp.ne.s32.totalorder %s85, %s88
      %p97 = scmp.eq.s32.totalorder %s27, 3
      %p98 = por %p96, %p97
      %p99 = scmp.ne.s32.totalorder %s88, %s89
      %p100 = scmp.eq.s32.totalorder %s27, 0
      %p101 = por %p99, %p100
      %p102 = scmp.ne.s32.totalorder %s88, %s89
      %p103 = scmp.eq.s32.totalorder %s28, 3
      %p104 = por %p102, %p103
      %p106 = scmp.ne.s32.totalorder %s89, %s105
      %p107 = scmp.eq.s32.totalorder %s28, 0
      %p108 = por %p106, %p107
      %s109 = ssub.s32 %s29, %s48
      %s110 = ssub.s32 %s30, %s44
      %s111 = sor.u32 %s109, %s110
      %p112 = scmp.eq.s32.totalorder %s111, 0
      %s114 = sadd.s32 %s113, 1
      %s115 = scalar_select %p112, %s113, %s114
      %p118 = pneg %p112
      %p119 = scmp.eq.s32.totalorder %s22, 3
      %p120 = por %p118, %p119
      %p121 = scmp.ne.s32.totalorder %s113, %s116
      %p122 = scmp.eq.s32.totalorder %s22, 0
      %p123 = por %p121, %p122
      %p124 = scmp.ne.s32.totalorder %s113, %s116
      %p125 = scmp.eq.s32.totalorder %s27, 3
      %p126 = por %p124, %p125
      %p127 = scmp.ne.s32.totalorder %s116, %s117
      %p128 = scmp.eq.s32.totalorder %s27, 0
      %p129 = por %p127, %p128
      %p130 = scmp.ne.s32.totalorder %s116, %s117
      %p131 = scmp.eq.s32.totalorder %s28, 3
      %p132 = por %p130, %p131
      %p134 = scmp.ne.s32.totalorder %s117, %s133
      %p135 = scmp.eq.s32.totalorder %s28, 0
      %p136 = por %p134, %p135
      %s137 = ssub.s32 %s29, %s48
      %s138 = ssub.s32 %s30, %s44
      %s139 = sor.u32 %s137, %s138
      %p140 = scmp.eq.s32.totalorder %s139, 0
      %s142 = sadd.s32 %s141, 1
      %s143 = scalar_select %p140, %s141, %s142
      %p146 = pneg %p140
      %p147 = scmp.eq.s32.totalorder %s22, 3
      %p148 = por %p146, %p147
      %p149 = scmp.ne.s32.totalorder %s141, %s144
      %p150 = scmp.eq.s32.totalorder %s22, 0
      %p151 = por %p149, %p150
      %p152 = scmp.ne.s32.totalorder %s141, %s144
      %p153 = scmp.eq.s32.totalorder %s27, 3
      %p154 = por %p152, %p153
      %p155 = scmp.ne.s32.totalorder %s144, %s145
      %p156 = scmp.eq.s32.totalorder %s27, 0
      %p157 = por %p155, %p156
      %p158 = scmp.ne.s32.totalorder %s144, %s145
      %p159 = scmp.eq.s32.totalorder %s28, 3
      %p160 = por %p158, %p159
      %p162 = scmp.ne.s32.totalorder %s145, %s161
      %p163 = scmp.eq.s32.totalorder %s28, 0
      %p164 = por %p162, %p163
      %p165 = scmp.le.s32.totalorder 1, %s22
      %p166 = scmp.lt.s32.totalorder %s22, 5
      %p167 = pnand %p165, %p166
      %p168 = pneg %p167
      // Predicated region
      $region9: #{tpu_custom_call.1} parent=5 // pred_check
        _
      $region10: #{tpu_custom_call.1} parent=5 // pred_check_branch
        %170 = sbr.rel (%p167) target = $region12
      $region11: #{tpu_custom_call.1} parent=5 // pred_region
        %s171 = ssub.s32 %s22, 1
      $region12: #{tpu_custom_call.1} parent=5 // pred_fallthru
        _
      %p172 = scmp.lt.s32.totalorder %s22, 4
      // Predicated region
      $region13: #{tpu_custom_call.1} parent=5 // pred_check
        %p173 = pneg %p172
      $region14: #{tpu_custom_call.1} parent=5 // pred_check_branch
        %175 = sbr.rel (%p173) target = $region16
      $region15: #{tpu_custom_call.1} parent=5 // pred_region
        // Predicated region
        $region17: #{tpu_custom_call.1} parent=15 // pred_check
          %p176 = pneg %p65
        $region18: #{tpu_custom_call.1} parent=15 // pred_check_branch
          %178 = sbr.rel (%p176) target = $region20
        $region19: #{tpu_custom_call.1} parent=15 // pred_region
          %s179 = sand.u32 %s55, 1
          %s180 = scalar_lea.sflag [#allocation3], %s179
          %s181 = sand.u32 %s55, 1
          %s182 = smul.addr %s181, 8
          %s183 = scalar_lea.vmem [#allocation2], %s182
          %s184 = sadd.s32 %s30, %s31
          %s186 = ssub.s32 128, 128
          %187 = vsyncadd %s180, %s186
          %s188 = smul.addr %s29, 2
          %s189 = sadd.s32 %s184, %s188
          %s190 = smul.addr %s189, 128
          %s191 = scalar_lea.hbm %s0, %s190
          %s193 = sshll.u32 %s183, 4
          %s194 = int_to_ptr.vmem [resolvable:$true] %s193
          %196 = dma.hbm_to_vmem [thread:$0]  %s191, 128, %s194, %s180
        $region20: #{tpu_custom_call.1} parent=15 // pred_fallthru
          _
        // Predicated region
        $region21: #{tpu_custom_call.1} parent=15 // pred_check
          %p197 = pneg %p95
        $region22: #{tpu_custom_call.1} parent=15 // pred_check_branch
          %199 = sbr.rel (%p197) target = $region24
        $region23: #{tpu_custom_call.1} parent=15 // pred_region
          #allocation11 [shape = 'u32[6]{0}', space=smem, size = 0x18, scoped, tag = 'DMA stride descriptor']
          %s200 = sand.u32 %s85, 1
          %s201 = scalar_lea.sflag [#allocation6], %s200
          %s202 = sand.u32 %s85, 1
          %s203 = smul.addr %s202, 160
          %s204 = scalar_lea.vmem [#allocation5], %s203
          %s205 = sadd.s32 %s30, %s31
          %s206 = smul.u32 4, %s205
          %s208 = ssub.s32 2560, 2560
          %209 = vsyncadd %s201, %s208
          %s210 = smul.addr %s29, 40
          %s211 = sadd.s32 %s206, %s210
          %s212 = smul.addr %s211, 128
          %s213 = scalar_lea.hbm %s1, %s212
          %s215 = sshll.u32 1, 14
          %s216 = sxor.u32 4294967295, %s215
          %s218 = sld [smem:[#allocation0]]
          %s219 = sadd.s32 2, %s218
          %s221 = sshll.u32 7, 26
          %s222 = sxor.u32 4294967295, %s221
          %s223 = sand.u32 0, %s222
          %s224 = sshll.u32 %s219, 26
          %s225 = sor.u32 %s223, %s224
          %s226 = sshll.u32 %s204, 4
          %s227 = int_to_ptr.vmem [resolvable:$true] %s226
          %233 = sst [smem:[#allocation11]] 1024
          %s234 = scalar_lea.smem [#allocation11], 1
          %235 = sst [smem:[%s234]] 512
          %s236 = scalar_lea.smem [#allocation11], 2
          %237 = sst [smem:[%s236]] 4
          %s238 = scalar_lea.smem [#allocation11], 3
          %239 = sst [smem:[%s238]] 128
          %s240 = scalar_lea.smem [#allocation11], 4
          %241 = sst [smem:[%s240]] 128
          %s242 = scalar_lea.smem [#allocation11], 5
          %243 = sst [smem:[%s242]] 8
          %245 = dma.general %s213, 2560, %s227, %s201, [#allocation10], [#allocation11], %s225, 0
        $region24: #{tpu_custom_call.1} parent=15 // pred_fallthru
          _
      $region16: #{tpu_custom_call.1} parent=5 // pred_fallthru
        _
      %p246 = scmp.le.s32.totalorder 1, %s22
      %p247 = scmp.lt.s32.totalorder %s22, 5
      %p248 = pnand %p246, %p247
      %p249 = pneg %p248
      // Predicated region
      $region25: #{tpu_custom_call.1} parent=5 // pred_check
        _
      $region26: #{tpu_custom_call.1} parent=5 // pred_check_branch
        %251 = sbr.rel (%p248) target = $region28
      $region27: #{tpu_custom_call.1} parent=5 // pred_region
        %s252 = ssub.s32 %s22, 1
        %s253 = sand.u32 %s58, 1
        %s254 = scalar_lea.sflag [#allocation3], %s253
        %s255 = sand.u32 %s58, 1
        %s256 = smul.addr %s255, 8
        %s257 = scalar_lea.vmem [#allocation2], %s256
        // Predicated region
        $region29: #{tpu_custom_call.1} parent=27 // pred_check
          %p258 = pneg %p71
        $region30: #{tpu_custom_call.1} parent=27 // pred_check_branch
          %260 = sbr.rel (%p258) target = $region32
        $region31: #{tpu_custom_call.1} parent=27 // pred_region
          %261 = dma.done %s254, 128
        $region32: #{tpu_custom_call.1} parent=27 // pred_fallthru
          _
        %s262 = sand.u32 %s88, 1
        %s263 = scalar_lea.sflag [#allocation6], %s262
        %s264 = sand.u32 %s88, 1
        %s265 = smul.addr %s264, 160
        %s266 = scalar_lea.vmem [#allocation5], %s265
        // Predicated region
        $region33: #{tpu_custom_call.1} parent=27 // pred_check
          %p267 = pneg %p101
        $region34: #{tpu_custom_call.1} parent=27 // pred_check_branch
          %269 = sbr.rel (%p267) target = $region36
        $region35: #{tpu_custom_call.1} parent=27 // pred_region
          %270 = dma.done %s263, 2560
        $region36: #{tpu_custom_call.1} parent=27 // pred_fallthru
          _
        %s271 = sand.u32 %s58, 1
        %s272 = scalar_lea.sflag [#allocation3], %s271
        %s273 = sand.u32 %s58, 1
        %s274 = smul.addr %s273, 8
        %s275 = scalar_lea.vmem [#allocation2], %s274
        %p276 = pneg %p71
        %p277 = pneg %p68
        %s278 = sand.u32 %s88, 1
        %s279 = scalar_lea.sflag [#allocation6], %s278
        %s280 = sand.u32 %s88, 1
        %s281 = smul.addr %s280, 160
        %s282 = scalar_lea.vmem [#allocation5], %s281
        %p283 = pneg %p101
        %p284 = pneg %p98
        %p285 = pneg %p129
        %p286 = pneg %p126
        %s287 = sand.u32 %s116, 1
        %s288 = scalar_lea.sflag [#allocation4], %s287
        %s289 = sand.u32 %s116, 1
        %s290 = smul.addr %s289, 8
        %s291 = scalar_lea.vmem [#allocation7], %s290
        %p292 = pneg %p157
        %p293 = pneg %p154
        %s294 = sand.u32 %s144, 1
        %s295 = scalar_lea.sflag [#allocation9], %s294
        %s296 = sand.u32 %s144, 1
        %s297 = smul.addr %s296, 8
        %s298 = scalar_lea.vmem [#allocation8], %s297
        %s299 = sadd.s32 %s33, %s34
        %s300 = sadd.s32 %s33, %s34
        %s301 = smul.u32 4, %s300
        %p302 = scmp.eq.s32.totalorder %s34, 0
        // Predicated region
        $region37: #{tpu_custom_call.1} parent=27 // pred_check
          %p303 = pneg %p302
        $region38: #{tpu_custom_call.1} parent=27 // pred_check_branch
          %305 = sbr.rel (%p303) target = $region40
        $region39: #{tpu_custom_call.1} parent=27 // pred_region
          %306 = vst [vmem:[%s291] sm:$0xff] 0.0
          %307 = vst [vmem:[%s298] sm:$0xff] 0.0
        $region40: #{tpu_custom_call.1} parent=27 // pred_fallthru
          _
        %v308 = vld [vmem:[%s257] sm:$0xff]
        %v309 = vunpack.c.0.s8 %v308
        %v310 = vunpack.c.1.s8 %v308
        %v311 = vunpack.c.2.s8 %v308
        %v312 = vunpack.c.3.s8 %v308
        %vm313 = vcmp.ne.s32.totalorder %v309, 0
        %vm314 = vcmp.ne.s32.totalorder %v310, 0
        %vm315 = vcmp.ne.s32.totalorder %v311, 0
        %vm316 = vcmp.ne.s32.totalorder %v312, 0
        %v317 = vsel %vm313, 1, 0
        %v318 = vsel %vm314, 1, 0
        %v319 = vsel %vm315, 1, 0
        %v320 = vsel %vm316, 1, 0
        %v321 = vcvt.s32.f32 %v317
        %v322 = vcvt.s32.f32 %v318
        %v323 = vcvt.s32.f32 %v319
        %v324 = vcvt.s32.f32 %v320
        %vm325 = vcmp.eq.s32.totalorder %v309, 1
        %vm326 = vcmp.eq.s32.totalorder %v310, 1
        %vm327 = vcmp.eq.s32.totalorder %v311, 1
        %vm328 = vcmp.eq.s32.totalorder %v312, 1
        %vm329 = vcmp.eq.s32.totalorder %v309, 2
        %vm330 = vcmp.eq.s32.totalorder %v310, 2
        %vm331 = vcmp.eq.s32.totalorder %v311, 2
        %vm332 = vcmp.eq.s32.totalorder %v312, 2
        %vm333 = vcmp.eq.s32.totalorder %v309, 3
        %vm334 = vcmp.eq.s32.totalorder %v310, 3
        %vm335 = vcmp.eq.s32.totalorder %v311, 3
        %vm336 = vcmp.eq.s32.totalorder %v312, 3
        %vm337 = vcmp.eq.s32.totalorder %v309, 4
        %vm338 = vcmp.eq.s32.totalorder %v310, 4
        %vm339 = vcmp.eq.s32.totalorder %v311, 4
        %vm340 = vcmp.eq.s32.totalorder %v312, 4
        %vm341 = vcmp.eq.s32.totalorder %v309, 5
        %vm342 = vcmp.eq.s32.totalorder %v310, 5
        %vm343 = vcmp.eq.s32.totalorder %v311, 5
        %vm344 = vcmp.eq.s32.totalorder %v312, 5
        %v345 = vld [vmem:[%s298] sm:$0xff]
        %v346 = vadd.f32 %v321, %v322
        %v347 = vadd.f32 %v346, %v323
        %v348 = vadd.f32 %v347, %v324
        %v349 = vadd.f32 %v345, %v348
        %350 = vst [vmem:[%s298] sm:$0xff] %v349
        %v351 = vld [vmem:[%s266] sm:$0xff]
        %v352 = vld [vmem:[%s266 + $0x8] sm:$0xff]
        %v353 = vld [vmem:[%s266 + $0x10] sm:$0xff]
        %v354 = vld [vmem:[%s266 + $0x18] sm:$0xff]
        %v355 = vmax.f32 %v351, 0.0
        %v356 = vmax.f32 %v352, 0.0
        %v357 = vmax.f32 %v353, 0.0
        %v358 = vmax.f32 %v354, 0.0
        %s359 = scalar_lea.vmem %s266, 32 [#allocation5]
        %v360 = vld [vmem:[%s359] sm:$0xff]
        %v361 = vld [vmem:[%s359 + $0x8] sm:$0xff]
        %v362 = vld [vmem:[%s359 + $0x10] sm:$0xff]
        %v363 = vld [vmem:[%s359 + $0x18] sm:$0xff]
        %v364 = vmax.f32 %v355, %v360
        %v365 = vmax.f32 %v356, %v361
        %v366 = vmax.f32 %v357, %v362
        %v367 = vmax.f32 %v358, %v363
        %s368 = scalar_lea.vmem %s266, 64 [#allocation5]
        %v369 = vld [vmem:[%s368] sm:$0xff]
        %v370 = vld [vmem:[%s368 + $0x8] sm:$0xff]
        %v371 = vld [vmem:[%s368 + $0x10] sm:$0xff]
        %v372 = vld [vmem:[%s368 + $0x18] sm:$0xff]
        %v373 = vmax.f32 %v364, %v369
        %v374 = vmax.f32 %v365, %v370
        %v375 = vmax.f32 %v366, %v371
        %v376 = vmax.f32 %v367, %v372
        %s377 = scalar_lea.vmem %s266, 96 [#allocation5]
        %v378 = vld [vmem:[%s377] sm:$0xff]
        %v379 = vld [vmem:[%s377 + $0x8] sm:$0xff]
        %v380 = vld [vmem:[%s377 + $0x10] sm:$0xff]
        %v381 = vld [vmem:[%s377 + $0x18] sm:$0xff]
        %v382 = vmax.f32 %v373, %v378
        %v383 = vmax.f32 %v374, %v379
        %v384 = vmax.f32 %v375, %v380
        %v385 = vmax.f32 %v376, %v381
        %s386 = scalar_lea.vmem %s266, 128 [#allocation5]
        %v387 = vld [vmem:[%s386] sm:$0xff]
        %v388 = vld [vmem:[%s386 + $0x8] sm:$0xff]
        %v389 = vld [vmem:[%s386 + $0x10] sm:$0xff]
        %v390 = vld [vmem:[%s386 + $0x18] sm:$0xff]
        %v391 = vmax.f32 %v382, %v387
        %v392 = vmax.f32 %v383, %v388
        %v393 = vmax.f32 %v384, %v389
        %v394 = vmax.f32 %v385, %v390
        %v395 = vsub.f32 0.0, %v391
        %v396 = vsub.f32 0.0, %v392
        %v397 = vsub.f32 0.0, %v393
        %v398 = vsub.f32 0.0, %v394
        %v399 = vmul.f32 %v395, 1.442695
        %v400 = vpow.pop %v399
        %v401 = vmul.f32 %v396, 1.442695
        %v402 = vpow.pop %v401
        %v403 = vmul.f32 %v397, 1.442695
        %v404 = vpow.pop %v403
        %v405 = vmul.f32 %v398, 1.442695
        %v406 = vpow.pop %v405
        %v407 = vsub.f32 %v351, %v391
        %v408 = vsub.f32 %v352, %v392
        %v409 = vsub.f32 %v353, %v393
        %v410 = vsub.f32 %v354, %v394
        %v411 = vmul.f32 %v407, 1.442695
        %v412 = vpow.pop %v411
        %v413 = vmul.f32 %v408, 1.442695
        %v414 = vpow.pop %v413
        %v415 = vmul.f32 %v409, 1.442695
        %v416 = vpow.pop %v415
        %v417 = vmul.f32 %v410, 1.442695
        %v418 = vpow.pop %v417
        %v419 = vadd.f32 %v400, %v412
        %v420 = vadd.f32 %v402, %v414
        %v421 = vadd.f32 %v404, %v416
        %v422 = vadd.f32 %v406, %v418
        %v423 = vsel %vm325, %v351, 0.0
        %v424 = vsel %vm326, %v352, 0.0
        %v425 = vsel %vm327, %v353, 0.0
        %v426 = vsel %vm328, %v354, 0.0
        %v427 = vsub.f32 %v360, %v391
        %v428 = vsub.f32 %v361, %v392
        %v429 = vsub.f32 %v362, %v393
        %v430 = vsub.f32 %v363, %v394
        %v431 = vmul.f32 %v427, 1.442695
        %v432 = vpow.pop %v431
        %v433 = vmul.f32 %v428, 1.442695
        %v434 = vpow.pop %v433
        %v435 = vmul.f32 %v429, 1.442695
        %v436 = vpow.pop %v435
        %v437 = vmul.f32 %v430, 1.442695
        %v438 = vpow.pop %v437
        %v439 = vadd.f32 %v419, %v432
        %v440 = vadd.f32 %v420, %v434
        %v441 = vadd.f32 %v421, %v436
        %v442 = vadd.f32 %v422, %v438
        %v443 = vsel %vm329, %v360, %v423
        %v444 = vsel %vm330, %v361, %v424
        %v445 = vsel %vm331, %v362, %v425
        %v446 = vsel %vm332, %v363, %v426
        %v447 = vsub.f32 %v369, %v391
        %v448 = vsub.f32 %v370, %v392
        %v449 = vsub.f32 %v371, %v393
        %v450 = vsub.f32 %v372, %v394
        %v451 = vmul.f32 %v447, 1.442695
        %v452 = vpow.pop %v451
        %v453 = vmul.f32 %v448, 1.442695
        %v454 = vpow.pop %v453
        %v455 = vmul.f32 %v449, 1.442695
        %v456 = vpow.pop %v455
        %v457 = vmul.f32 %v450, 1.442695
        %v458 = vpow.pop %v457
        %v459 = vadd.f32 %v439, %v452
        %v460 = vadd.f32 %v440, %v454
        %v461 = vadd.f32 %v441, %v456
        %v462 = vadd.f32 %v442, %v458
        %v463 = vsel %vm333, %v369, %v443
        %v464 = vsel %vm334, %v370, %v444
        %v465 = vsel %vm335, %v371, %v445
        %v466 = vsel %vm336, %v372, %v446
        %v467 = vsub.f32 %v378, %v391
        %v468 = vsub.f32 %v379, %v392
        %v469 = vsub.f32 %v380, %v393
        %v470 = vsub.f32 %v381, %v394
        %v471 = vmul.f32 %v467, 1.442695
        %v472 = vpow.pop %v471
        %v473 = vmul.f32 %v468, 1.442695
        %v474 = vpow.pop %v473
        %v475 = vmul.f32 %v469, 1.442695
        %v476 = vpow.pop %v475
        %v477 = vmul.f32 %v470, 1.442695
        %v478 = vpow.pop %v477
        %v479 = vadd.f32 %v459, %v472
        %v480 = vadd.f32 %v460, %v474
        %v481 = vadd.f32 %v461, %v476
        %v482 = vadd.f32 %v462, %v478
        %v483 = vsel %vm337, %v378, %v463
        %v484 = vsel %vm338, %v379, %v464
        %v485 = vsel %vm339, %v380, %v465
        %v486 = vsel %vm340, %v381, %v466
        %v487 = vsub.f32 %v387, %v391
        %v488 = vsub.f32 %v388, %v392
        %v489 = vsub.f32 %v389, %v393
        %v490 = vsub.f32 %v390, %v394
        %v491 = vmul.f32 %v487, 1.442695
        %v492 = vpow.pop %v491
        %v493 = vmul.f32 %v488, 1.442695
        %v494 = vpow.pop %v493
        %v495 = vmul.f32 %v489, 1.442695
        %v496 = vpow.pop %v495
        %v497 = vmul.f32 %v490, 1.442695
        %v498 = vpow.pop %v497
        %v499 = vadd.f32 %v479, %v492
        %v500 = vadd.f32 %v480, %v494
        %v501 = vadd.f32 %v481, %v496
        %v502 = vadd.f32 %v482, %v498
        %v503 = vsel %vm341, %v387, %v483
        %v504 = vsel %vm342, %v388, %v484
        %v505 = vsel %vm343, %v389, %v485
        %v506 = vsel %vm344, %v390, %v486
        %v507 = vlog2.pop %v499
        %v508 = vmul.f32 %v507, 0.6931472
        %v509 = vlog2.pop %v500
        %v510 = vmul.f32 %v509, 0.6931472
        %v511 = vlog2.pop %v501
        %v512 = vmul.f32 %v511, 0.6931472
        %v513 = vlog2.pop %v502
        %v514 = vmul.f32 %v513, 0.6931472
        %v515 = vadd.f32 %v391, %v508
        %v516 = vadd.f32 %v392, %v510
        %v517 = vadd.f32 %v393, %v512
        %v518 = vadd.f32 %v394, %v514
        %v519 = vsub.f32 %v515, %v503
        %v520 = vsub.f32 %v516, %v504
        %v521 = vsub.f32 %v517, %v505
        %v522 = vsub.f32 %v518, %v506
        %v523 = vmul.f32 %v321, %v519
        %v524 = vmul.f32 %v322, %v520
        %v525 = vmul.f32 %v323, %v521
        %v526 = vmul.f32 %v324, %v522
        %v527 = vld [vmem:[%s291] sm:$0xff]
        %v528 = vadd.f32 %v523, %v524
        %v529 = vadd.f32 %v528, %v525
        %v530 = vadd.f32 %v529, %v526
        %v531 = vadd.f32 %v527, %v530
        %532 = vst [vmem:[%s291] sm:$0xff] %v531
        %s533 = sand.u32 %s116, 1
        %s534 = scalar_lea.sflag [#allocation4], %s533
        %s535 = sand.u32 %s116, 1
        %s536 = smul.addr %s535, 8
        %s537 = scalar_lea.vmem [#allocation7], %s536
        %s538 = sand.u32 %s144, 1
        %s539 = scalar_lea.sflag [#allocation9], %s538
        %s540 = sand.u32 %s144, 1
        %s541 = smul.addr %s540, 8
        %s542 = scalar_lea.vmem [#allocation8], %s541
        // Predicated region
        $region41: #{tpu_custom_call.1} parent=27 // pred_check
          %p543 = pneg %p126
        $region42: #{tpu_custom_call.1} parent=27 // pred_check_branch
          %545 = sbr.rel (%p543) target = $region44
        $region43: #{tpu_custom_call.1} parent=27 // pred_region
          %s547 = ssub.s32 128, 128
          %548 = vsyncadd %s534, %s547
          %s549 = smul.addr %s32, 2
          %s550 = sadd.s32 %s33, %s549
          %s551 = smul.addr %s550, 128
          %s552 = scalar_lea.hbm %s2, %s551
          %s554 = sshll.u32 %s537, 4
          %s555 = int_to_ptr.vmem [resolvable:$true] %s554
          %557 = dma.vmem_to_hbm [thread:$0]  %s555, 128, %s552, %s534
        $region44: #{tpu_custom_call.1} parent=27 // pred_fallthru
          _
        // Predicated region
        $region45: #{tpu_custom_call.1} parent=27 // pred_check
          %p558 = pneg %p154
        $region46: #{tpu_custom_call.1} parent=27 // pred_check_branch
          %560 = sbr.rel (%p558) target = $region48
        $region47: #{tpu_custom_call.1} parent=27 // pred_region
          %s562 = ssub.s32 128, 128
          %563 = vsyncadd %s539, %s562
          %s564 = smul.addr %s32, 2
          %s565 = sadd.s32 %s33, %s564
          %s566 = smul.addr %s565, 128
          %s567 = scalar_lea.hbm %s3, %s566
          %s569 = sshll.u32 %s542, 4
          %s570 = int_to_ptr.vmem [resolvable:$true] %s569
          %572 = dma.vmem_to_hbm [thread:$0]  %s570, 128, %s567, %s539
        $region48: #{tpu_custom_call.1} parent=27 // pred_fallthru
          _
      $region28: #{tpu_custom_call.1} parent=5 // pred_fallthru
        _
      %p573 = scmp.le.s32.totalorder 2, %s22
      // Predicated region
      $region49: #{tpu_custom_call.1} parent=5 // pred_check
        %p574 = pneg %p573
      $region50: #{tpu_custom_call.1} parent=5 // pred_check_branch
        %576 = sbr.rel (%p574) target = $region52
      $region51: #{tpu_custom_call.1} parent=5 // pred_region
        %s577 = ssub.s32 %s22, 2
        // Predicated region
        $region53: #{tpu_custom_call.1} parent=51 // pred_check
          %p578 = pneg %p132
        $region54: #{tpu_custom_call.1} parent=51 // pred_check_branch
          %580 = sbr.rel (%p578) target = $region56
        $region55: #{tpu_custom_call.1} parent=51 // pred_region
          %s581 = sand.u32 %s117, 1
          %s582 = scalar_lea.sflag [#allocation4], %s581
          %s583 = sand.u32 %s117, 1
          %s584 = smul.addr %s583, 8
          %s585 = scalar_lea.vmem [#allocation7], %s584
          %586 = dma.done %s582, 128
        $region56: #{tpu_custom_call.1} parent=51 // pred_fallthru
          _
        // Predicated region
        $region57: #{tpu_custom_call.1} parent=51 // pred_check
          %p587 = pneg %p160
        $region58: #{tpu_custom_call.1} parent=51 // pred_check_branch
          %589 = sbr.rel (%p587) target = $region60
        $region59: #{tpu_custom_call.1} parent=51 // pred_region
          %s590 = sand.u32 %s145, 1
          %s591 = scalar_lea.sflag [#allocation9], %s590
          %s592 = sand.u32 %s145, 1
          %s593 = smul.addr %s592, 8
          %s594 = scalar_lea.vmem [#allocation8], %s593
          %595 = dma.done %s591, 128
        $region60: #{tpu_custom_call.1} parent=51 // pred_fallthru
          _
      $region52: #{tpu_custom_call.1} parent=5 // pred_fallthru
        _
    $region6: #{tpu_custom_call.1} parent=1 // loop_footer
      %s26 = sadd.s32 1, %s22
    $region7: #{tpu_custom_call.1} parent=1 // loop_footer_branch
      %21 = sbr.rel target = $region3
    $region8: #{tpu_custom_call.1} parent=1 // loop_exit
      _
    %596 = vsyncpa [#allocation3], 1
    %s597 = scalar_lea.sflag [#allocation3], 1
    %598 = vsyncpa %s597, 1
    %599 = vsyncpa [#allocation6], 1
    %s600 = scalar_lea.sflag [#allocation6], 1
    %601 = vsyncpa %s600, 1
    %602 = vsyncpa [#allocation4], 1
    %s603 = scalar_lea.sflag [#allocation4], 1
    %604 = vsyncpa %s603, 1
    %605 = vsyncpa [#allocation9], 1
    %s606 = scalar_lea.sflag [#allocation9], 1
    %607 = vsyncpa %s606, 1

</llo_original>
